<compile_context>
chip_gen: v5e
topology: v5e:2x2
jax: 0.10.0
libtpu: 0.0.40
codegen_flags: <defaults>
</compile_context>

<pallas_src>
import jax
import jax.numpy as jnp
from jax.experimental import pallas as pl
from jax.experimental.pallas import tpu as pltpu


def critic_kernel(x_ref, w1_ref, b1_ref, w2_ref, b2_ref, w3_ref, b3_ref, out_ref):
    # fc1 + relu: bf16 MXU matmul, f32 accumulate, f32 elementwise.
    x = x_ref[...].astype(jnp.bfloat16)      # no-op if state is already bf16
    h1 = jnp.dot(x, w1_ref[...], preferred_element_type=jnp.float32)
    h1 = jnp.maximum(h1 + b1_ref[...], 0.0)

    # fc2 + relu
    h2 = jnp.dot(h1.astype(jnp.bfloat16), w2_ref[...],
                 preferred_element_type=jnp.float32)
    h2 = jnp.maximum(h2 + b2_ref[...], 0.0)

    # fc3 (out_features == 1): VPU broadcast-multiply + lane reduce (keeps the
    # N=1 matmul off the MXU drain), then relayout the (tb, 1) column to a
    # lane-dense (1, tb) row so the store path is dense vst + contiguous DMA.
    v = jnp.sum(h2 * w3_ref[...], axis=-1, keepdims=True)       # (tb, 1)
    out_ref[...] = (v.T + b3_ref[...]).astype(out_ref.dtype)    # (1, tb)


def _round_up(x, m):
    return ((x + m - 1) // m) * m


def _default_num_cores():
    # Best-effort: v7x has 2 TensorCores per chip; v5e/v6e have 1.
    try:
        kind = jax.devices()[0].device_kind.lower()
    except Exception:
        return 1
    return 2 if ("v7" in kind or "7x" in kind) else 1


def critic_forward(state, params, *, batch_tile=2048, num_cores=None):
    """state: (B, state_dim) float32 or bfloat16 -> (B, 1) float32.

    If the upstream producer already has bf16 state, pass it directly: the
    kernel only casts at the MXU input, so there is no extra HBM pass.
    """
    w1, b1, w2, b2, w3, b3 = params
    B, state_dim = state.shape
    if num_cores is None:
        num_cores = _default_num_cores()

    # ---- batch tiling ------------------------------------------------------
    # Fewest possible grid steps (per-step overhead dominates this tiny
    # kernel), but at least `num_cores` steps rounded to a multiple of
    # `num_cores` so both v7x TensorCores get work.  Multi-step tiles are
    # 128-row aligned (MXU-M alignment + lane-dense 128-wide output blocks);
    # a single-step tile only needs 8-row (sublane) alignment.
    padded = _round_up(B, 8)
    n_steps = max(num_cores, pl.cdiv(padded, batch_tile))
    n_steps = _round_up(n_steps, num_cores)
    tb = padded if n_steps == 1 else _round_up(pl.cdiv(padded, n_steps), 128)
    grid_n = pl.cdiv(B, tb)
    if grid_n == 1:
        tb = padded                      # single step: exact (8-aligned) tile
    out_len = grid_n * tb

    # Biases as (1, out) rows (broadcast over the batch in-kernel); fc3 weight
    # as a (1, 64) row for the VPU reduce path.
    b1r = b1.reshape(1, -1).astype(jnp.float32)
    b2r = b2.reshape(1, -1).astype(jnp.float32)
    b3r = b3.reshape(1, -1).astype(jnp.float32)
    w3r = w3.reshape(1, -1).astype(jnp.float32)

    # Weights/biases: same block every grid step -> stay VMEM-resident (loaded
    # from HBM once).  (pl.Buffered(1) would drop the redundant second buffer
    # for these constant blocks; ~25 KiB total, so skipped as pure cleanup.)
    resident = lambda a: pl.BlockSpec(a.shape, lambda i: (0, 0))

    param_bytes = sum(int(a.size) * a.dtype.itemsize
                      for a in (w1, b1r, w2, b2r, w3r, b3r))
    cost = pl.CostEstimate(
        flops=2 * B * (state_dim * 128 + 128 * 64 + 64),
        transcendentals=0,
        bytes_accessed=B * state_dim * state.dtype.itemsize + param_bytes + B * 4,
    )

    out = pl.pallas_call(
        critic_kernel,
        out_shape=jax.ShapeDtypeStruct((1, out_len), jnp.float32),
        grid=(grid_n,),
        in_specs=[
            pl.BlockSpec((tb, state_dim), lambda i: (i, 0)),   # state (streamed)
            resident(w1), resident(b1r),
            resident(w2), resident(b2r),
            resident(w3r), resident(b3r),
        ],
        # Lane-dense output row: (1, tb) block of a (1, grid_n*tb) buffer.
        out_specs=pl.BlockSpec((1, tb), lambda i: (0, i)),
        compiler_params=pltpu.CompilerParams(
            dimension_semantics=("parallel",),  # v7x: shard batch tiles over 2 TCs
        ),
        cost_estimate=cost,
    )(state, w1, b1r, w2, b2r, w3r, b3r)

    # Drop any padded rows and restore the module's (B, 1) output shape.
    return out[0, :B].reshape(B, 1)


def init_params(key, state_dim):
    """Deterministic init matching nn.Linear default (uniform +-1/sqrt(fan_in)).

    Weights are stored as (in, out) -- transposed vs. PyTorch's (out, in).
    fc1/fc2 weights are kept in bf16 (native MXU dtype on v5e/v6e/v7x);
    fc3 weight and all biases stay f32 (elementwise path)."""
    dims = [(state_dim, 128), (128, 64), (64, 1)]
    params = []
    for li, (fan_in, fan_out) in enumerate(dims):
        key, kw, kb = jax.random.split(key, 3)
        bound = 1.0 / jnp.sqrt(jnp.float32(fan_in))
        w = jax.random.uniform(kw, (fan_in, fan_out), jnp.float32, -bound, bound)
        b = jax.random.uniform(kb, (fan_out,), jnp.float32, -bound, bound)
        if li < 2:
            w = w.astype(jnp.bfloat16)
        params.extend([w, b])
    return tuple(params)


def reference_forward(state, params):
    """Pure-JAX reference computing the exact same mixed-precision recipe."""
    w1, b1, w2, b2, w3, b3 = params
    h1 = jnp.dot(state.astype(jnp.bfloat16), w1,
                 preferred_element_type=jnp.float32)
    h1 = jnp.maximum(h1 + b1, 0.0)
    h2 = jnp.dot(h1.astype(jnp.bfloat16), w2,
                 preferred_element_type=jnp.float32)
    h2 = jnp.maximum(h2 + b2, 0.0)
    v = jnp.sum(h2 * w3.reshape(1, -1).astype(jnp.float32), axis=-1, keepdims=True)
    return v + b3


if __name__ == "__main__":
    key = jax.random.PRNGKey(0)
    k_param, k1, k2, k3 = jax.random.split(key, 4)

    state_dim = 32
    params = init_params(k_param, state_dim)

    # (batch, state dtype, wrapper kwargs, PRNG key)
    cases = (
        (8,   jnp.float32,  {},                   k1),  # tiny batch, single tile
        (300, jnp.float32,  {"batch_tile": 128},  k2),  # multi-tile + partial final tile
        (512, jnp.bfloat16, {"num_cores": 2},     k3),  # bf16 state stream, even grid (v7x TC split)
    )

    ok = True
    for batch, dtype, kwargs, ks in cases:
        state = jax.random.normal(ks, (batch, state_dim), jnp.float32).astype(dtype)
        out = jax.block_until_ready(critic_forward(state, params, **kwargs))
        ref = reference_forward(state, params)
        assert out.shape == (batch, 1), out.shape
        ok &= bool(jnp.allclose(out, ref, atol=1e-3, rtol=1e-3))

    assert ok, "mismatch vs reference"
    print("KERNEL_OK")
</pallas_src>

<mosaic_0001>
module attributes {stable_mosaic.version = 11 : i64} {
  func.func @critic_kernel(%arg0: i32, %arg1: memref<8x32xf32, #tpu.memory_space<vmem>>, %arg2: memref<32x128xbf16, #tpu.memory_space<vmem>>, %arg3: memref<1x128xf32, #tpu.memory_space<vmem>>, %arg4: memref<128x64xbf16, #tpu.memory_space<vmem>>, %arg5: memref<1x64xf32, #tpu.memory_space<vmem>>, %arg6: memref<1x64xf32, #tpu.memory_space<vmem>>, %arg7: memref<1x1xf32, #tpu.memory_space<vmem>>, %arg8: memref<1x8xf32, #tpu.memory_space<vmem>>) attributes {dimension_semantics = [#tpu.dimension_semantics<parallel>], iteration_bounds = array<i64: 1>, scalar_prefetch = 0 : i64, scratch_operands = 0 : i64, tpu.core_type = #tpu.core_type<tc>, window_params = [{transform_indices = @transform_0, window_bounds = array<i64: 8, 32>}, {pipeline_mode = #tpu.pipeline_mode<synchronous>, transform_indices = @transform_1, window_bounds = array<i64: 32, 128>}, {pipeline_mode = #tpu.pipeline_mode<synchronous>, transform_indices = @transform_2, window_bounds = array<i64: 1, 128>}, {pipeline_mode = #tpu.pipeline_mode<synchronous>, transform_indices = @transform_3, window_bounds = array<i64: 128, 64>}, {pipeline_mode = #tpu.pipeline_mode<synchronous>, transform_indices = @transform_4, window_bounds = array<i64: 1, 64>}, {pipeline_mode = #tpu.pipeline_mode<synchronous>, transform_indices = @transform_5, window_bounds = array<i64: 1, 64>}, {pipeline_mode = #tpu.pipeline_mode<synchronous>, transform_indices = @transform_6, window_bounds = array<i64: 1, 1>}, {transform_indices = @transform_7, window_bounds = array<i64: 1, 8>}]} {
    %c0 = arith.constant 0 : index
    %c0_0 = arith.constant 0 : index
    %0 = vector.load %arg1[%c0, %c0_0] : memref<8x32xf32, #tpu.memory_space<vmem>>, vector<8x32xf32>
    %1 = arith.truncf %0 : vector<8x32xf32> to vector<8x32xbf16>
    %c0_1 = arith.constant 0 : index
    %c0_2 = arith.constant 0 : index
    %2 = vector.load %arg2[%c0_1, %c0_2] : memref<32x128xbf16, #tpu.memory_space<vmem>>, vector<32x128xbf16>
    %cst = arith.constant dense<0.000000e+00> : vector<8x128xf32>
    %3 = tpu.matmul %1, %2, %cst {dimension_numbers = #tpu.dot_dimension_numbers<[1], [0], [0], [1], [0, 0, 1, 1], [], []>} : vector<8x32xbf16>, vector<32x128xbf16>, vector<8x128xf32> -> vector<8x128xf32>
    %c0_3 = arith.constant 0 : index
    %c0_4 = arith.constant 0 : index
    %4 = vector.load %arg3[%c0_3, %c0_4] : memref<1x128xf32, #tpu.memory_space<vmem>>, vector<1x128xf32>
    %5 = vector.broadcast %4 : vector<1x128xf32> to vector<8x128xf32>
    %6 = arith.addf %3, %5 : vector<8x128xf32>
    %cst_5 = arith.constant 0.000000e+00 : f32
    %7 = vector.broadcast %cst_5 : f32 to vector<8x128xf32>
    %8 = arith.maximumf %6, %7 : vector<8x128xf32>
    %9 = arith.truncf %8 : vector<8x128xf32> to vector<8x128xbf16>
    %c0_6 = arith.constant 0 : index
    %c0_7 = arith.constant 0 : index
    %10 = vector.load %arg4[%c0_6, %c0_7] : memref<128x64xbf16, #tpu.memory_space<vmem>>, vector<128x64xbf16>
    %cst_8 = arith.constant dense<0.000000e+00> : vector<8x64xf32>
    %11 = tpu.matmul %9, %10, %cst_8 {dimension_numbers = #tpu.dot_dimension_numbers<[1], [0], [0], [1], [0, 0, 1, 1], [], []>} : vector<8x128xbf16>, vector<128x64xbf16>, vector<8x64xf32> -> vector<8x64xf32>
    %c0_9 = arith.constant 0 : index
    %c0_10 = arith.constant 0 : index
    %12 = vector.load %arg5[%c0_9, %c0_10] : memref<1x64xf32, #tpu.memory_space<vmem>>, vector<1x64xf32>
    %13 = vector.broadcast %12 : vector<1x64xf32> to vector<8x64xf32>
    %14 = arith.addf %11, %13 : vector<8x64xf32>
    %cst_11 = arith.constant 0.000000e+00 : f32
    %15 = vector.broadcast %cst_11 : f32 to vector<8x64xf32>
    %16 = arith.maximumf %14, %15 : vector<8x64xf32>
    %c0_12 = arith.constant 0 : index
    %c0_13 = arith.constant 0 : index
    %17 = vector.load %arg6[%c0_12, %c0_13] : memref<1x64xf32, #tpu.memory_space<vmem>>, vector<1x64xf32>
    %18 = vector.broadcast %17 : vector<1x64xf32> to vector<8x64xf32>
    %19 = arith.mulf %16, %18 : vector<8x64xf32>
    %cst_14 = arith.constant dense<0.000000e+00> : vector<8xf32>
    %20 = vector.multi_reduction <add>, %19, %cst_14 [1] : vector<8x64xf32> to vector<8xf32>
    %21 = vector.shape_cast %20 : vector<8xf32> to vector<8x1xf32>
    %22 = tpu.transpose %21, [1, 0] : vector<8x1xf32> -> vector<1x8xf32>
    %c0_15 = arith.constant 0 : index
    %c0_16 = arith.constant 0 : index
    %23 = vector.load %arg7[%c0_15, %c0_16] : memref<1x1xf32, #tpu.memory_space<vmem>>, vector<1x1xf32>
    %24 = vector.broadcast %23 : vector<1x1xf32> to vector<1x8xf32>
    %25 = arith.addf %22, %24 : vector<1x8xf32>
    %c0_17 = arith.constant 0 : index
    %c0_18 = arith.constant 0 : index
    %26 = vector.load %arg8[%c0_17, %c0_18] : memref<1x8xf32, #tpu.memory_space<vmem>>, vector<1x8xf32>
    tpu.vector_store %arg8[%c0_17, %c0_18], %25 {strides = array<i32>} : memref<1x8xf32, #tpu.memory_space<vmem>>, vector<1x8xf32>,
    return
  }
  func.func @transform_0(%arg0: i32) -> (i32, i32) {
    %c0_i32 = arith.constant 0 : i32
    %c0_i32_0 = arith.constant 0 : i32
    return %arg0, %c0_i32 : i32, i32
  }
  func.func @transform_1(%arg0: i32) -> (i32, i32) {
    %c0_i32 = arith.constant 0 : i32
    %c0_i32_0 = arith.constant 0 : i32
    %c0_i32_1 = arith.constant 0 : i32
    return %c0_i32, %c0_i32_0 : i32, i32
  }
  func.func @transform_2(%arg0: i32) -> (i32, i32) {
    %c0_i32 = arith.constant 0 : i32
    %c0_i32_0 = arith.constant 0 : i32
    %c0_i32_1 = arith.constant 0 : i32
    return %c0_i32, %c0_i32_0 : i32, i32
  }
  func.func @transform_3(%arg0: i32) -> (i32, i32) {
    %c0_i32 = arith.constant 0 : i32
    %c0_i32_0 = arith.constant 0 : i32
    %c0_i32_1 = arith.constant 0 : i32
    return %c0_i32, %c0_i32_0 : i32, i32
  }
  func.func @transform_4(%arg0: i32) -> (i32, i32) {
    %c0_i32 = arith.constant 0 : i32
    %c0_i32_0 = arith.constant 0 : i32
    %c0_i32_1 = arith.constant 0 : i32
    return %c0_i32, %c0_i32_0 : i32, i32
  }
  func.func @transform_5(%arg0: i32) -> (i32, i32) {
    %c0_i32 = arith.constant 0 : i32
    %c0_i32_0 = arith.constant 0 : i32
    %c0_i32_1 = arith.constant 0 : i32
    return %c0_i32, %c0_i32_0 : i32, i32
  }
  func.func @transform_6(%arg0: i32) -> (i32, i32) {
    %c0_i32 = arith.constant 0 : i32
    %c0_i32_0 = arith.constant 0 : i32
    %c0_i32_1 = arith.constant 0 : i32
    return %c0_i32, %c0_i32_0 : i32, i32
  }
  func.func @transform_7(%arg0: i32) -> (i32, i32) {
    %c0_i32 = arith.constant 0 : i32
    %c0_i32_0 = arith.constant 0 : i32
    return %c0_i32, %arg0 : i32, i32
  }
}

</mosaic_0001>

<llo_original>
// kernel: tpu_custom_call.1
$region0: #{tpu_custom_call.1}
  #allocation0 [shape = 'u32[]', space=smem, size = 0x4, offset = 0x4, fixed_abs, tag = 'smem constant byte address 0x4 - core index']
  #allocation1 [shape = 'u32[72,128]{1,0:T(1,128)}', space=vmem, size = 0x9000, scoped, tag = 'internal scratch']
  #allocation2 [shape = 'f32[1,1]{1,0:T(1,128)S(1)}', space=vmem, size = 0x200, scoped, tag = 'scoped memory for tpu_custom_call.1']
  %s0 = inlined_call_operand.vmem [shape: f32[8,32], index: 0, kind: input, shape index: {}]
  %s1 = inlined_call_operand.vmem [shape: bf16[32,128], index: 1, kind: input, shape index: {}]
  %s2 = inlined_call_operand.vmem [shape: f32[1,128], index: 2, kind: input, shape index: {}]
  %s3 = inlined_call_operand.vmem [shape: bf16[128,64], index: 3, kind: input, shape index: {}]
  %s4 = inlined_call_operand.vmem [shape: f32[1,64], index: 4, kind: input, shape index: {}]
  %s5 = inlined_call_operand.vmem [shape: f32[1,64], index: 5, kind: input, shape index: {}]
  %s6 = inlined_call_operand.<no memory space> [shape: f32[1,1], index: 6, kind: input, shape index: {}]
  %s7 = inlined_call_operand.hbm [shape: f32[1,8], index: 7, kind: output, shape index: {}]
  %s8 = sld [smem:[#allocation0]]
  $region38: #{tpu_custom_call.1} parent=0
    _
  %s10 = ssub.s32 1, %s8
  %s11 = scalar_select 0, %s10, %s8
  %v12 = vstv %s6
  %13 = vst [vmem:[#allocation2] sm:$0x1] %v12
  $region1: #{tpu_custom_call.1} parent=0
    #allocation3 [shape = 'u8[512]{0}', space=vmem, size = 0x400, scoped, tag = 'output window, operand 0, single buffered']
    #allocation4 [shape = 's32[1]{0}', space=sflag, size = 0x4, scoped, tag = 'scoped memory for tpu_custom_call.1']
    %14 = vsyncpa [#allocation4], 0
    // Predicated region
    $region2: #{tpu_custom_call.1} parent=1 // pred_check
      _
    $region3: #{tpu_custom_call.1} parent=1 // pred_check_branch
      %16 = sbr.rel (0) target = $region5
    $region4: #{tpu_custom_call.1} parent=1 // pred_region
      _
    $region5: #{tpu_custom_call.1} parent=1 // pred_fallthru
      _
    // Predicated region
    $region6: #{tpu_custom_call.1} parent=1 // pred_check
      _
    $region7: #{tpu_custom_call.1} parent=1 // pred_check_branch
      %18 = sbr.rel (0) target = $region9
    $region8: #{tpu_custom_call.1} parent=1 // pred_region
      _
    $region9: #{tpu_custom_call.1} parent=1 // pred_fallthru
      _
    // Predicated region
    $region10: #{tpu_custom_call.1} parent=1 // pred_check
      _
    $region11: #{tpu_custom_call.1} parent=1 // pred_check_branch
      %20 = sbr.rel (0) target = $region13
    $region12: #{tpu_custom_call.1} parent=1 // pred_region
      _
    $region13: #{tpu_custom_call.1} parent=1 // pred_fallthru
      _
    // Predicated region
    $region14: #{tpu_custom_call.1} parent=1 // pred_check
      _
    $region15: #{tpu_custom_call.1} parent=1 // pred_check_branch
      %22 = sbr.rel (0) target = $region17
    $region16: #{tpu_custom_call.1} parent=1 // pred_region
      _
    $region17: #{tpu_custom_call.1} parent=1 // pred_fallthru
      _
    // Predicated region
    $region18: #{tpu_custom_call.1} parent=1 // pred_check
      _
    $region19: #{tpu_custom_call.1} parent=1 // pred_check_branch
      %24 = sbr.rel (0) target = $region21
    $region20: #{tpu_custom_call.1} parent=1 // pred_region
      _
    $region21: #{tpu_custom_call.1} parent=1 // pred_fallthru
      _
    // Predicated region
    $region22: #{tpu_custom_call.1} parent=1 // pred_check
      _
    $region23: #{tpu_custom_call.1} parent=1 // pred_check_branch
      %26 = sbr.rel (0) target = $region25
    $region24: #{tpu_custom_call.1} parent=1 // pred_region
      _
    $region25: #{tpu_custom_call.1} parent=1 // pred_fallthru
      _
    // Predicated region
    $region26: #{tpu_custom_call.1} parent=1 // pred_check
      _
    $region27: #{tpu_custom_call.1} parent=1 // pred_check_branch
      %28 = sbr.rel (0) target = $region29
    $region28: #{tpu_custom_call.1} parent=1 // pred_region
      _
    $region29: #{tpu_custom_call.1} parent=1 // pred_fallthru
      _
    %v30 = vld [vmem:[%s0] sm:$0xff]
    %v31 = vpack.c.bf16 %v30, %v30
    %v32 = vld [vmem:[%s1] sm:$0xf]
    %v33 = vld [vmem:[%s1 + $0x4] sm:$0xf]
    %v34 = vld [vmem:[%s1 + $0x8] sm:$0xf]
    %v35 = vld [vmem:[%s1 + $0xc] sm:$0xf]
    %v36 = vld [vmem:[%s2] sm:$0x1]
    %v38 = vperm.slane %v36, 0
    %v44 = vunpack.c.l.b16 %v32
    %v45 = vunpack.c.l.b16 %v33
    %v46 = vunpack.c.l.b16 %v34
    %v47 = vunpack.c.l.b16 %v35
    %v48 = vpack.c.b16 %v45, %v44
    %v49 = vpack.c.b16 %v47, %v46
    %vm52 = vcmask 261120
    %v54 = vsel %vm52, %v31, 0
    %56 = vmatpush.bf16.msra.mxu0 0
    %57 = vmatpush.bf16.msra.mxu0 0
    %58 = vmatpush.bf16.msra.mxu0 0
    %59 = vmatpush.bf16.msra.mxu0 0
    %60 = vmatpush.bf16.msra.mxu0 0
    %61 = vmatpush.bf16.msra.mxu0 0
    %62 = vmatpush.bf16.msra.mxu0 %v49
    %63 = vmatpush.bf16.msra.mxu0 %v48
    %64 = vmatmul.bf16.gmra.mxu0 %v54
    %v65 = vpop.f32.mrf.mxu0
    %v66 = vadd.f32 %v38, %v65
    %v67 = vpop.f32.mrf.mxu0
    %68 = vdwg.mxu0
    %v69 = vmax.f32 %v66, 0.0
    %v70 = vpack.c.bf16 %v69, %v69
    %v71 = vld [vmem:[%s3] sm:$0xf]
    %v72 = vld [vmem:[%s3 + $0x4] sm:$0xf]
    %v73 = vld [vmem:[%s3 + $0x8] sm:$0xf]
    %v74 = vld [vmem:[%s3 + $0xc] sm:$0xf]
    %v75 = vld [vmem:[%s3 + $0x10] sm:$0xf]
    %v76 = vld [vmem:[%s3 + $0x14] sm:$0xf]
    %v77 = vld [vmem:[%s3 + $0x18] sm:$0xf]
    %v78 = vld [vmem:[%s3 + $0x1c] sm:$0xf]
    %v79 = vld [vmem:[%s3 + $0x20] sm:$0xf]
    %v80 = vld [vmem:[%s3 + $0x24] sm:$0xf]
    %v81 = vld [vmem:[%s3 + $0x28] sm:$0xf]
    %v82 = vld [vmem:[%s3 + $0x2c] sm:$0xf]
    %v83 = vld [vmem:[%s3 + $0x30] sm:$0xf]
    %v84 = vld [vmem:[%s3 + $0x34] sm:$0xf]
    %v85 = vld [vmem:[%s3 + $0x38] sm:$0xf]
    %v86 = vld [vmem:[%s3 + $0x3c] sm:$0xf]
    %v87 = vld [vmem:[%s4] sm:$0x1]
    %v89 = vperm.slane %v87, 0
    %v107 = vunpack.c.l.b16 %v71
    %v108 = vunpack.c.l.b16 %v72
    %v109 = vunpack.c.l.b16 %v73
    %v110 = vunpack.c.l.b16 %v74
    %v111 = vunpack.c.l.b16 %v75
    %v112 = vunpack.c.l.b16 %v76
    %v113 = vunpack.c.l.b16 %v77
    %v114 = vunpack.c.l.b16 %v78
    %v115 = vunpack.c.l.b16 %v79
    %v116 = vunpack.c.l.b16 %v80
    %v117 = vunpack.c.l.b16 %v81
    %v118 = vunpack.c.l.b16 %v82
    %v119 = vunpack.c.l.b16 %v83
    %v120 = vunpack.c.l.b16 %v84
    %v121 = vunpack.c.l.b16 %v85
    %v122 = vunpack.c.l.b16 %v86
    %v123 = vpack.c.b16 %v108, %v107
    %v124 = vpack.c.b16 %v110, %v109
    %v125 = vpack.c.b16 %v112, %v111
    %v126 = vpack.c.b16 %v114, %v113
    %v127 = vpack.c.b16 %v116, %v115
    %v128 = vpack.c.b16 %v118, %v117
    %v129 = vpack.c.b16 %v120, %v119
    %v130 = vpack.c.b16 %v122, %v121
    %139 = vmatpush.bf16.msra.mxu0 %v130
    %140 = vmatpush.bf16.msra.mxu0 %v129
    %141 = vmatpush.bf16.msra.mxu0 %v128
    %142 = vmatpush.bf16.msra.mxu0 %v127
    %143 = vmatpush.bf16.msra.mxu0 %v126
    %144 = vmatpush.bf16.msra.mxu0 %v125
    %145 = vmatpush.bf16.msra.mxu0 %v124
    %146 = vmatpush.bf16.msra.mxu0 %v123
    %147 = vmatmul.bf16.gmra.mxu0 %v70
    %v148 = vpop.f32.mrf.mxu0
    %v149 = vadd.f32 %v89, %v148
    %v150 = vpop.f32.mrf.mxu0
    %151 = vdwg.mxu0
    %v152 = vmax.f32 %v149, 0.0
    %v153 = vld [vmem:[%s5] sm:$0x1]
    %v155 = vperm.slane %v153, 0
    %v157 = vmul.f32 %v152, %v155
    %vm158 = vcmask 523264
    %v159 = vsel %vm158, %v157, 0.0
    %160 = vadd.xlane.f32.xlu0 %v159
    %v161 = vpop.xlane.xlu0 %160
    %162 = vxpose.xlu0.b32.start [1/16] %v161, 128
    %163 = vxpose.xlu0.b32.cont [2/16] 0.0, 128
    %164 = vxpose.xlu0.b32.cont [3/16] 0.0, 128
    %165 = vxpose.xlu0.b32.cont [4/16] 0.0, 128
    %166 = vxpose.xlu0.b32.cont [5/16] 0.0, 128
    %167 = vxpose.xlu0.b32.cont [6/16] 0.0, 128
    %168 = vxpose.xlu0.b32.cont [7/16] 0.0, 128
    %169 = vxpose.xlu0.b32.cont [8/16] 0.0, 128
    %170 = vxpose.xlu0.b32.cont [9/16] 0.0, 128
    %171 = vxpose.xlu0.b32.cont [10/16] 0.0, 128
    %172 = vxpose.xlu0.b32.cont [11/16] 0.0, 128
    %173 = vxpose.xlu0.b32.cont [12/16] 0.0, 128
    %174 = vxpose.xlu0.b32.cont [13/16] 0.0, 128
    %175 = vxpose.xlu0.b32.cont [14/16] 0.0, 128
    %176 = vxpose.xlu0.b32.cont [15/16] 0.0, 128
    %177 = vxpose.xlu0.b32.end [16/16] 0.0, 128
    %v178 = vpop.trf.xlu0
    %v179 = vpop.trf.xlu0
    %v180 = vpop.trf.xlu0
    %v181 = vpop.trf.xlu0
    %v182 = vpop.trf.xlu0
    %v183 = vpop.trf.xlu0
    %v184 = vpop.trf.xlu0
    %v185 = vpop.trf.xlu0
    %v186 = vpop.trf.xlu0
    %v187 = vpop.trf.xlu0
    %v188 = vpop.trf.xlu0
    %v189 = vpop.trf.xlu0
    %v190 = vpop.trf.xlu0
    %v191 = vpop.trf.xlu0
    %v192 = vpop.trf.xlu0
    %v193 = vpop.trf.xlu0
    %v194 = vld [vmem:[#allocation2] sm:$0x1]
    %196 = vset.pattern.permute.xlu0 0
    %197 = vperm.xlu0 %196, %v194
    %v198 = vpop.permute.xlu0 %197
    %v200 = vperm.slane %v198, 0
    %v201 = vadd.f32 %v178, %v200
    %vm202 = vcmask 57344
    %203 = vst.msk [vmem:[#allocation3] sm:$0x1] %vm202, %v201
    // Predicated region
    $region30: #{tpu_custom_call.1} parent=1 // pred_check
      _
    $region31: #{tpu_custom_call.1} parent=1 // pred_check_branch
      %205 = sbr.rel (0) target = $region33
    $region32: #{tpu_custom_call.1} parent=1 // pred_region
      %207 = vsyncadd [#allocation4], 0
      %s209 = sshll.u32 [#allocation3], 4
      %s210 = int_to_ptr.vmem [resolvable:$true] %s209
      %s211 = sshll.u32 %s7, 4
      %s212 = int_to_ptr.hbm [resolvable:$true] %s211
      %214 = dma.vmem_to_hbm [thread:$0]  %s210, 16, %s212, [#allocation4]
    $region33: #{tpu_custom_call.1} parent=1 // pred_fallthru
      _
    // Predicated region
    $region34: #{tpu_custom_call.1} parent=1 // pred_check
      _
    $region35: #{tpu_custom_call.1} parent=1 // pred_check_branch
      %216 = sbr.rel (0) target = $region37
    $region36: #{tpu_custom_call.1} parent=1 // pred_region
      %218 = dma.done [#allocation4], 16
    $region37: #{tpu_custom_call.1} parent=1 // pred_fallthru
      _
    %219 = vsyncpa [#allocation4], 1

</llo_original>
